<compile_context>
chip_gen: v6e
topology: v6e:2x2x1
jax: 0.10.0
libtpu: 0.0.40
codegen_flags: <defaults>
</compile_context>

<pallas_src>
import functools

import jax
import jax.numpy as jnp
from jax import lax
from jax.experimental import pallas as pl
from jax.experimental.pallas import tpu as pltpu

_NEG_BIG = -1e30   # finite "masked logit" value (NOT -inf: keeps exp/alpha NaN-free)


def _round_up(x, m):
    return (x + m - 1) // m * m


def _vmem_physical_bytes():
    """Best-effort physical VMEM query with a conservative (v7x per-TC) fallback."""
    try:
        info = pltpu.get_tpu_info()
        for attr in ("vmem_capacity_bytes", "vmem_bytes", "vmem_size_bytes"):
            v = getattr(info, attr, None)
            if v:
                return int(v)
    except Exception:
        pass
    return 64 << 20


def _tile_footprint_bytes(tm, tn, d_pad):
    feats = 2 * (tm + tn) * d_pad * 2            # double-buffered bf16 anchor + contrast
    temps = 5 * tm * tn * 4                      # s / exp / mask / where temporaries
    scratch = 3 * tm * 4 + 2 * (tm + tn) * 8     # accumulators, labels, counts, output
    return feats + temps + scratch


def _choose_tiles(n, d_pad, budget):
    """Pick (tm, tn, n_pad) with tn % tm == 0 and n_pad % tn == 0, within a VMEM budget."""
    n16 = _round_up(n, 16)
    if n16 <= 1024:
        # Single column sweep; >= 2 row tiles so both v7x TensorCores get work.
        tn = n16
        tm = max(8, n16 // 2)
        while (_tile_footprint_bytes(tm, tn, d_pad) > budget
               and tm >= 16 and n16 % (tm // 2) == 0):
            tm //= 2
        return tm, tn, n16
    tm, tn = 512, 1024
    while _tile_footprint_bytes(tm, tn, d_pad) > budget and (tm > 128 or tn > 256):
        if tn >= 2 * tm:
            tn //= 2
        else:
            tm //= 2
    return tm, tn, _round_up(n, tn)


def _supcon_kernel(feat_row_ref, feat_col_ref, lab_row_ref, lab_col_ref, pos_ref,
                   out_ref, m_scr, l_scr, ps_scr,
                   *, temperature, base_temperature, n_valid, n_pad):
    # feat_row_ref: (TM, Dp) bf16 anchor tile, already scaled by 1/T in the wrapper
    # feat_col_ref: (TN, Dp) bf16 contrast tile
    # lab_row_ref:  (TM, 1) i32 (pad = -1)     lab_col_ref: (1, TN) i32 (pad = -2)
    # pos_ref:      (TM, 1) f32 positives per row (precomputed; pad = 0)
    # out_ref:      (TM, 1) f32 per-row loss (written at the last column step)
    i = pl.program_id(0)               # anchor (row) tile     -- "parallel"
    j = pl.program_id(1)               # contrast (column) tile -- reduction ("arbitrary")
    n_col = pl.num_programs(1)

    tm = feat_row_ref.shape[0]
    tn = feat_col_ref.shape[0]

    @pl.when(j == 0)
    def _():
        m_scr[...] = jnp.full_like(m_scr, _NEG_BIG)
        l_scr[...] = jnp.zeros_like(l_scr)
        ps_scr[...] = jnp.zeros_like(ps_scr)

    # s_ij = <f_i / T, f_j>; bf16 operands, f32 accumulation on the MXU.
    s = lax.dot_general(feat_row_ref[...], feat_col_ref[...],
                        dimension_numbers=(((1,), (1,)), ((), ())),
                        preferred_element_type=jnp.float32)            # (TM, TN) f32

    # Positive-pair mask needs no boundary checks: sentinel-padded labels never match.
    same = lab_row_ref[...] == lab_col_ref[...]                        # (TM, TN) bool

    def accumulate(s_eff, pm):
        # Online log-sum-exp over valid columns; masked entries carry -1e30 so their
        # exp underflows to exactly 0 (every row always has >= 1 valid column).
        m_prev = m_scr[...]
        m_new = jnp.maximum(m_prev, jnp.max(s_eff, axis=1, keepdims=True))
        alpha = jnp.exp(m_prev - m_new)
        p = jnp.exp(s_eff - m_new)
        l_scr[...] = alpha * l_scr[...] + jnp.sum(p, axis=1, keepdims=True)
        ps_scr[...] = ps_scr[...] + jnp.sum(jnp.where(pm, s_eff, 0.0),
                                            axis=1, keepdims=True)
        m_scr[...] = m_new

    # Scalar predicates: does this tile touch the diagonal or the padded columns?
    touches_diag = jnp.logical_and(i * tm < (j + 1) * tn, j * tn < (i + 1) * tm)
    if n_valid < n_pad:
        needs_mask = jnp.logical_or(touches_diag, (j + 1) * tn > n_valid)
    else:
        needs_mask = touches_diag

    @pl.when(needs_mask)
    def _():
        # Boundary tile: masks from broadcastable (tm,1)/(1,tn) iotas (no (TM,TN) int32).
        row_idx = i * tm + lax.broadcasted_iota(jnp.int32, (tm, 1), 0)
        col_idx = j * tn + lax.broadcasted_iota(jnp.int32, (1, tn), 1)
        not_diag = row_idx != col_idx
        lm = jnp.logical_and(not_diag, col_idx < n_valid)   # denominator (logits) mask
        accumulate(jnp.where(lm, s, _NEG_BIG), jnp.logical_and(same, not_diag))

    @pl.when(jnp.logical_not(needs_mask))
    def _():
        # Interior tile: every column is a valid non-diagonal, non-padded contrast.
        accumulate(s, same)

    @pl.when(j == n_col - 1)
    def _():
        pc = pos_ref[...]
        log_denom = m_scr[...] + jnp.log(l_scr[...])
        safe_pc = jnp.where(pc > 0.0, pc, 1.0)
        mlpp = (ps_scr[...] - pc * log_denom) / safe_pc
        # Rows with no positives (incl. padded rows) contribute 0 instead of NaN.
        mlpp = jnp.where(pc > 0.0, mlpp, 0.0)
        out_ref[...] = (-(temperature / base_temperature) * mlpp).astype(out_ref.dtype)


def supcon_loss(features, labels=None, mask=None,
                temperature=0.07, contrast_mode='all', base_temperature=0.07):
    """Pallas implementation of SupConLoss.forward (contrast_mode='all')."""
    if features.ndim < 3:
        raise ValueError('`features` needs to be [bsz, n_views, ...]')
    if features.ndim > 3:
        features = features.reshape(features.shape[0], features.shape[1], -1)
    if contrast_mode != 'all':
        # TODO(synk): contrast_mode='one' (anchor = first view only) not implemented here.
        raise ValueError('Only contrast_mode="all" is implemented')

    bsz, n_views, dim = features.shape
    features = features.astype(jnp.float32)

    if labels is not None and mask is not None:
        raise ValueError('Cannot define both `labels` and `mask`')
    if mask is not None:
        # TODO(synk): explicit (possibly asymmetric) NxN `mask` not supported by the
        # label-based in-kernel mask generation; would need an NxN mask pipeline.
        raise NotImplementedError('explicit `mask` not supported; pass `labels` or neither')
    if labels is None:
        # SimCLR degenerate case: positives = other views of the same sample.
        eff_labels = jnp.arange(bsz, dtype=jnp.int32)
    else:
        eff_labels = jnp.asarray(labels).reshape(-1).astype(jnp.int32)
        if eff_labels.shape[0] != bsz:
            raise ValueError('Num of labels does not match num of features')

    N = n_views * bsz
    # contrast_feature = cat(unbind(features, dim=1), dim=0) -> view-major [N, D]
    cf = jnp.transpose(features, (1, 0, 2)).reshape(N, dim)
    full_labels = jnp.tile(eff_labels, n_views)

    # Per-row positive count, from labels only (done once in JAX, O(bsz^2)):
    # row i has n_views * (#samples sharing its label) - 1 positives (self excluded).
    cnt_per_sample = jnp.sum(eff_labels[:, None] == eff_labels[None, :],
                             axis=1).astype(jnp.float32)
    pos_cnt = jnp.tile(n_views * cnt_per_sample - 1.0, n_views)          # (N,)

    # ---- generation-aware tiling & VMEM budget ----
    d_pad = _round_up(dim, 128)
    phys_vmem = _vmem_physical_bytes()                # 128 MiB v5e/v6e, 64 MiB v7x
    vmem_limit = int(min(phys_vmem * 3 // 4, 96 << 20))
    tm, tn, n_pad = _choose_tiles(N, d_pad, budget=vmem_limit // 2)
    n_row_tiles = n_pad // tm
    n_col_tiles = n_pad // tn

    cf = jnp.pad(cf, ((0, n_pad - N), (0, d_pad - dim)))
    inv_t = 1.0 / float(temperature)
    anchor = (cf * inv_t).astype(jnp.bfloat16)        # 1/T folded into the bf16 anchor copy
    contrast = cf.astype(jnp.bfloat16)

    lab_row = jnp.pad(full_labels, (0, n_pad - N), constant_values=-1).reshape(n_pad, 1)
    lab_col = jnp.pad(full_labels, (0, n_pad - N), constant_values=-2).reshape(1, n_pad)
    pos_cnt = jnp.pad(pos_cnt, (0, n_pad - N)).reshape(n_pad, 1)

    kernel = functools.partial(
        _supcon_kernel, temperature=float(temperature),
        base_temperature=float(base_temperature), n_valid=N, n_pad=n_pad)

    cost = pl.CostEstimate(
        flops=2 * n_pad * n_pad * d_pad,
        transcendentals=n_pad * n_pad,
        bytes_accessed=(n_row_tiles + 1) * n_pad * d_pad * 2 + 3 * n_pad * 4)

    loss_rows = pl.pallas_call(
        kernel,
        out_shape=jax.ShapeDtypeStruct((n_pad, 1), jnp.float32),
        grid_spec=pltpu.PrefetchScalarGridSpec(
            num_scalar_prefetch=0,
            grid=(n_row_tiles, n_col_tiles),
            in_specs=[
                pl.BlockSpec((tm, d_pad), lambda i, j: (i, 0)),   # scaled bf16 anchor tile
                pl.BlockSpec((tn, d_pad), lambda i, j: (j, 0)),   # bf16 contrast tile
                pl.BlockSpec((tm, 1), lambda i, j: (i, 0)),       # row labels (pad = -1)
                pl.BlockSpec((1, tn), lambda i, j: (0, j)),       # col labels (pad = -2)
                pl.BlockSpec((tm, 1), lambda i, j: (i, 0)),       # positives per row
            ],
            out_specs=pl.BlockSpec((tm, 1), lambda i, j: (i, 0)),
            scratch_shapes=[pltpu.VMEM((tm, 1), jnp.float32)] * 3,  # m, denom, sum(mask*s)
        ),
        compiler_params=pltpu.CompilerParams(
            dimension_semantics=("parallel", "arbitrary"),
            vmem_limit_bytes=vmem_limit),
        cost_estimate=cost,
    )(anchor, contrast, lab_row, lab_col, pos_cnt)

    # Tiny final reduction in JAX (padded / no-positive rows are already zero).
    return jnp.sum(loss_rows[:N, 0]) / N


def _reference_supcon(features, labels, temperature=0.07, base_temperature=0.07):
    """Pure-JAX f32 reference mirroring the PyTorch forward (contrast_mode='all')."""
    bsz, n_views, dim = features.shape
    labels = labels.reshape(-1, 1)
    mask = (labels == labels.T).astype(jnp.float32)
    cf = jnp.transpose(features, (1, 0, 2)).reshape(n_views * bsz, dim)
    N = n_views * bsz
    s = jnp.matmul(cf, cf.T, precision=lax.Precision.HIGHEST) / temperature
    logits = s - jnp.max(s, axis=1, keepdims=True)
    mask = jnp.tile(mask, (n_views, n_views))
    logits_mask = 1.0 - jnp.eye(N)
    mask = mask * logits_mask
    exp_logits = jnp.exp(logits) * logits_mask
    log_prob = logits - jnp.log(jnp.sum(exp_logits, axis=1, keepdims=True))
    mlpp = jnp.sum(mask * log_prob, axis=1) / jnp.sum(mask, axis=1)
    loss = -(temperature / base_temperature) * mlpp
    return jnp.mean(loss)


if __name__ == "__main__":
    key = jax.random.PRNGKey(0)

    def _norm(x):
        return x / jnp.linalg.norm(x, axis=-1, keepdims=True)

    # bf16 MXU inputs => loosened tolerances vs. the f32 reference (per review).
    ATOL, RTOL = 5e-2, 1e-2

    # 1) Small single-column path: bsz=8, n_views=2, dim=32 -> N=16, grid (2, 1).
    kf, kl = jax.random.split(key)
    feats = _norm(jax.random.normal(kf, (8, 2, 32), dtype=jnp.float32))
    labels = jax.random.randint(kl, (8,), 0, 3)
    loss = jax.block_until_ready(supcon_loss(feats, labels=labels))
    ref = jax.block_until_ready(_reference_supcon(feats, labels))
    assert jnp.allclose(loss, ref, atol=ATOL, rtol=RTOL), (loss, ref)

    # 2) SimCLR degenerate case (no labels, no mask).
    loss_u = jax.block_until_ready(supcon_loss(feats))
    ref_u = jax.block_until_ready(_reference_supcon(feats, jnp.arange(8)))
    assert jnp.allclose(loss_u, ref_u, atol=ATOL, rtol=RTOL), (loss_u, ref_u)

    # 3) Small path with sentinel-padded rows/cols: N=380 -> 384, D padded 60 -> 128.
    kf2, kl2 = jax.random.split(jax.random.PRNGKey(1))
    feats2 = _norm(jax.random.normal(kf2, (190, 2, 60), dtype=jnp.float32))
    labels2 = jax.random.randint(kl2, (190,), 0, 10)
    loss2 = jax.block_until_ready(supcon_loss(feats2, labels=labels2))
    ref2 = jax.block_until_ready(_reference_supcon(feats2, labels2))
    assert jnp.allclose(loss2, ref2, atol=ATOL, rtol=RTOL), (loss2, ref2)

    # 4) Large multi-tile path (online LSE + interior fast path + boundary tiles):
    #    N=1280 -> padded to 2048, tiles 512x1024, grid (4, 2).
    kf3, kl3 = jax.random.split(jax.random.PRNGKey(2))
    feats3 = _norm(jax.random.normal(kf3, (640, 2, 64), dtype=jnp.float32))
    labels3 = jax.random.randint(kl3, (640,), 0, 20)
    loss3 = jax.block_until_ready(supcon_loss(feats3, labels=labels3))
    ref3 = jax.block_until_ready(_reference_supcon(feats3, labels3))
    assert jnp.allclose(loss3, ref3, atol=ATOL, rtol=RTOL), (loss3, ref3)

    print("KERNEL_OK")
</pallas_src>

<mosaic_0001>
module attributes {stable_mosaic.version = 11 : i64} {
  func.func @_supcon_kernel(%arg0: i32, %arg1: i32, %arg2: memref<8x128xbf16, #tpu.memory_space<vmem>>, %arg3: memref<16x128xbf16, #tpu.memory_space<vmem>>, %arg4: memref<8x1xi32, #tpu.memory_space<vmem>>, %arg5: memref<1x16xi32, #tpu.memory_space<vmem>>, %arg6: memref<8x1xf32, #tpu.memory_space<vmem>>, %arg7: memref<8x1xf32, #tpu.memory_space<vmem>>, %arg8: memref<8x1xf32, #tpu.memory_space<vmem>>, %arg9: memref<8x1xf32, #tpu.memory_space<vmem>>, %arg10: memref<8x1xf32, #tpu.memory_space<vmem>>) attributes {dimension_semantics = [#tpu.dimension_semantics<parallel>, #tpu.dimension_semantics<arbitrary>], iteration_bounds = array<i64: 2, 1>, scalar_prefetch = 0 : i64, scratch_operands = 3 : i64, tpu.core_type = #tpu.core_type<tc>, window_params = [{transform_indices = @transform_0, window_bounds = array<i64: 8, 128>}, {transform_indices = @transform_1, window_bounds = array<i64: 16, 128>}, {transform_indices = @transform_2, window_bounds = array<i64: 8, 1>}, {transform_indices = @transform_3, window_bounds = array<i64: 1, 16>}, {transform_indices = @transform_4, window_bounds = array<i64: 8, 1>}, {transform_indices = @transform_5, window_bounds = array<i64: 8, 1>}]} {
    %c0_i32 = arith.constant 0 : i32
    %0 = arith.cmpi eq, %arg1, %c0_i32 : i32
    %1 = arith.extui %0 : i1 to i32
    %c0_i32_0 = arith.constant 0 : i32
    %2 = arith.cmpi ne, %1, %c0_i32_0 : i32
    scf.if %2 {
      %cst_15 = arith.constant -1.000000e+30 : f32
      %28 = vector.broadcast %cst_15 : f32 to vector<8x1xf32>
      %c0_16 = arith.constant 0 : index
      %c0_17 = arith.constant 0 : index
      %29 = vector.load %arg8[%c0_16, %c0_17] : memref<8x1xf32, #tpu.memory_space<vmem>>, vector<8x1xf32>
      tpu.vector_store %arg8[%c0_16, %c0_17], %28 {strides = array<i32>} : memref<8x1xf32, #tpu.memory_space<vmem>>, vector<8x1xf32>,
      %cst_18 = arith.constant 0.000000e+00 : f32
      %30 = vector.broadcast %cst_18 : f32 to vector<8x1xf32>
      %c0_19 = arith.constant 0 : index
      %c0_20 = arith.constant 0 : index
      %31 = vector.load %arg9[%c0_19, %c0_20] : memref<8x1xf32, #tpu.memory_space<vmem>>, vector<8x1xf32>
      tpu.vector_store %arg9[%c0_19, %c0_20], %30 {strides = array<i32>} : memref<8x1xf32, #tpu.memory_space<vmem>>, vector<8x1xf32>,
      %cst_21 = arith.constant 0.000000e+00 : f32
      %32 = vector.broadcast %cst_21 : f32 to vector<8x1xf32>
      %c0_22 = arith.constant 0 : index
      %c0_23 = arith.constant 0 : index
      %33 = vector.load %arg10[%c0_22, %c0_23] : memref<8x1xf32, #tpu.memory_space<vmem>>, vector<8x1xf32>
      tpu.vector_store %arg10[%c0_22, %c0_23], %32 {strides = array<i32>} : memref<8x1xf32, #tpu.memory_space<vmem>>, vector<8x1xf32>,
    } else {
    }
    %c0 = arith.constant 0 : index
    %c0_1 = arith.constant 0 : index
    %3 = vector.load %arg2[%c0, %c0_1] : memref<8x128xbf16, #tpu.memory_space<vmem>>, vector<8x128xbf16>
    %c0_2 = arith.constant 0 : index
    %c0_3 = arith.constant 0 : index
    %4 = vector.load %arg3[%c0_2, %c0_3] : memref<16x128xbf16, #tpu.memory_space<vmem>>, vector<16x128xbf16>
    %cst = arith.constant dense<0.000000e+00> : vector<8x16xf32>
    %5 = tpu.matmul %3, %4, %cst {dimension_numbers = #tpu.dot_dimension_numbers<[1], [1], [0], [0], [0, 0, 1, 0], [], []>} : vector<8x128xbf16>, vector<16x128xbf16>, vector<8x16xf32> -> vector<8x16xf32>
    %c0_4 = arith.constant 0 : index
    %c0_5 = arith.constant 0 : index
    %6 = vector.load %arg4[%c0_4, %c0_5] : memref<8x1xi32, #tpu.memory_space<vmem>>, vector<8x1xi32>
    %c0_6 = arith.constant 0 : index
    %c0_7 = arith.constant 0 : index
    %7 = vector.load %arg5[%c0_6, %c0_7] : memref<1x16xi32, #tpu.memory_space<vmem>>, vector<1x16xi32>
    %8 = vector.broadcast %6 : vector<8x1xi32> to vector<8x16xi32>
    %9 = vector.broadcast %7 : vector<1x16xi32> to vector<8x16xi32>
    %10 = arith.cmpi eq, %8, %9 : vector<8x16xi32>
    %c8_i32 = arith.constant 8 : i32
    %11 = arith.muli %arg0, %c8_i32 : i32
    %c1_i32 = arith.constant 1 : i32
    %12 = arith.addi %arg1, %c1_i32 : i32
    %c16_i32 = arith.constant 16 : i32
    %13 = arith.muli %12, %c16_i32 : i32
    %14 = arith.cmpi slt, %11, %13 : i32
    %c16_i32_8 = arith.constant 16 : i32
    %15 = arith.muli %arg1, %c16_i32_8 : i32
    %c1_i32_9 = arith.constant 1 : i32
    %16 = arith.addi %arg0, %c1_i32_9 : i32
    %c8_i32_10 = arith.constant 8 : i32
    %17 = arith.muli %16, %c8_i32_10 : i32
    %18 = arith.cmpi slt, %15, %17 : i32
    %19 = arith.andi %14, %18 : i1
    %20 = arith.extui %19 : i1 to i32
    %c0_i32_11 = arith.constant 0 : i32
    %21 = arith.cmpi ne, %20, %c0_i32_11 : i32
    scf.if %21 {
      %c8_i32_15 = arith.constant 8 : i32
      %28 = arith.muli %arg0, %c8_i32_15 : i32
      %29 = tpu.iota {dimensions = array<i32: 0>} : vector<8x1xi32>
      %30 = vector.broadcast %28 : i32 to vector<8x1xi32>
      %31 = arith.addi %30, %29 : vector<8x1xi32>
      %c16_i32_16 = arith.constant 16 : i32
      %32 = arith.muli %arg1, %c16_i32_16 : i32
      %33 = tpu.iota {dimensions = array<i32: 1>} : vector<1x16xi32>
      %34 = vector.broadcast %32 : i32 to vector<1x16xi32>
      %35 = arith.addi %34, %33 : vector<1x16xi32>
      %36 = vector.broadcast %31 : vector<8x1xi32> to vector<8x16xi32>
      %37 = vector.broadcast %35 : vector<1x16xi32> to vector<8x16xi32>
      %38 = arith.cmpi ne, %36, %37 : vector<8x16xi32>
      %c16_i32_17 = arith.constant 16 : i32
      %39 = vector.broadcast %c16_i32_17 : i32 to vector<1x16xi32>
      %40 = arith.cmpi slt, %35, %39 : vector<1x16xi32>
      %41 = vector.broadcast %40 : vector<1x16xi1> to vector<8x16xi1>
      %42 = arith.andi %38, %41 : vector<8x16xi1>
      %cst_18 = arith.constant -1.000000e+30 : f32
      %43 = vector.broadcast %cst_18 : f32 to vector<8x16xf32>
      %44 = arith.select %42, %5, %43 : vector<8x16xi1>, vector<8x16xf32>
      %45 = arith.andi %10, %38 : vector<8x16xi1>
      %c0_19 = arith.constant 0 : index
      %c0_20 = arith.constant 0 : index
      %46 = vector.load %arg8[%c0_19, %c0_20] : memref<8x1xf32, #tpu.memory_space<vmem>>, vector<8x1xf32>
      %cst_21 = arith.constant dense<0xFF800000> : vector<8xf32>
      %47 = vector.multi_reduction <maximumf>, %44, %cst_21 [1] : vector<8x16xf32> to vector<8xf32>
      %48 = vector.shape_cast %47 : vector<8xf32> to vector<8x1xf32>
      %49 = arith.maximumf %46, %48 : vector<8x1xf32>
      %50 = arith.subf %46, %49 : vector<8x1xf32>
      %51 = math.exp %50 : vector<8x1xf32>
      %52 = vector.broadcast %49 : vector<8x1xf32> to vector<8x16xf32>
      %53 = arith.subf %44, %52 : vector<8x16xf32>
      %54 = math.exp %53 : vector<8x16xf32>
      %c0_22 = arith.constant 0 : index
      %c0_23 = arith.constant 0 : index
      %55 = vector.load %arg9[%c0_22, %c0_23] : memref<8x1xf32, #tpu.memory_space<vmem>>, vector<8x1xf32>
      %56 = arith.mulf %51, %55 : vector<8x1xf32>
      %cst_24 = arith.constant dense<0.000000e+00> : vector<8xf32>
      %57 = vector.multi_reduction <add>, %54, %cst_24 [1] : vector<8x16xf32> to vector<8xf32>
      %58 = vector.shape_cast %57 : vector<8xf32> to vector<8x1xf32>
      %59 = arith.addf %56, %58 : vector<8x1xf32>
      %c0_25 = arith.constant 0 : index
      %c0_26 = arith.constant 0 : index
      %60 = vector.load %arg9[%c0_25, %c0_26] : memref<8x1xf32, #tpu.memory_space<vmem>>, vector<8x1xf32>
      tpu.vector_store %arg9[%c0_25, %c0_26], %59 {strides = array<i32>} : memref<8x1xf32, #tpu.memory_space<vmem>>, vector<8x1xf32>,
      %c0_27 = arith.constant 0 : index
      %c0_28 = arith.constant 0 : index
      %61 = vector.load %arg10[%c0_27, %c0_28] : memref<8x1xf32, #tpu.memory_space<vmem>>, vector<8x1xf32>
      %cst_29 = arith.constant 0.000000e+00 : f32
      %62 = vector.broadcast %cst_29 : f32 to vector<8x16xf32>
      %63 = arith.select %45, %44, %62 : vector<8x16xi1>, vector<8x16xf32>
      %cst_30 = arith.constant dense<0.000000e+00> : vector<8xf32>
      %64 = vector.multi_reduction <add>, %63, %cst_30 [1] : vector<8x16xf32> to vector<8xf32>
      %65 = vector.shape_cast %64 : vector<8xf32> to vector<8x1xf32>
      %66 = arith.addf %61, %65 : vector<8x1xf32>
      %c0_31 = arith.constant 0 : index
      %c0_32 = arith.constant 0 : index
      %67 = vector.load %arg10[%c0_31, %c0_32] : memref<8x1xf32, #tpu.memory_space<vmem>>, vector<8x1xf32>
      tpu.vector_store %arg10[%c0_31, %c0_32], %66 {strides = array<i32>} : memref<8x1xf32, #tpu.memory_space<vmem>>, vector<8x1xf32>,
      %c0_33 = arith.constant 0 : index
      %c0_34 = arith.constant 0 : index
      %68 = vector.load %arg8[%c0_33, %c0_34] : memref<8x1xf32, #tpu.memory_space<vmem>>, vector<8x1xf32>
      tpu.vector_store %arg8[%c0_33, %c0_34], %49 {strides = array<i32>} : memref<8x1xf32, #tpu.memory_space<vmem>>, vector<8x1xf32>,
    } else {
    }
    %true = arith.constant true
    %22 = arith.xori %19, %true : i1
    %23 = arith.extui %22 : i1 to i32
    %c0_i32_12 = arith.constant 0 : i32
    %24 = arith.cmpi ne, %23, %c0_i32_12 : i32
    scf.if %24 {
      %c0_15 = arith.constant 0 : index
      %c0_16 = arith.constant 0 : index
      %28 = vector.load %arg8[%c0_15, %c0_16] : memref<8x1xf32, #tpu.memory_space<vmem>>, vector<8x1xf32>
      %cst_17 = arith.constant dense<0xFF800000> : vector<8xf32>
      %29 = vector.multi_reduction <maximumf>, %5, %cst_17 [1] : vector<8x16xf32> to vector<8xf32>
      %30 = vector.shape_cast %29 : vector<8xf32> to vector<8x1xf32>
      %31 = arith.maximumf %28, %30 : vector<8x1xf32>
      %32 = arith.subf %28, %31 : vector<8x1xf32>
      %33 = math.exp %32 : vector<8x1xf32>
      %34 = vector.broadcast %31 : vector<8x1xf32> to vector<8x16xf32>
      %35 = arith.subf %5, %34 : vector<8x16xf32>
      %36 = math.exp %35 : vector<8x16xf32>
      %c0_18 = arith.constant 0 : index
      %c0_19 = arith.constant 0 : index
      %37 = vector.load %arg9[%c0_18, %c0_19] : memref<8x1xf32, #tpu.memory_space<vmem>>, vector<8x1xf32>
      %38 = arith.mulf %33, %37 : vector<8x1xf32>
      %cst_20 = arith.constant dense<0.000000e+00> : vector<8xf32>
      %39 = vector.multi_reduction <add>, %36, %cst_20 [1] : vector<8x16xf32> to vector<8xf32>
      %40 = vector.shape_cast %39 : vector<8xf32> to vector<8x1xf32>
      %41 = arith.addf %38, %40 : vector<8x1xf32>
      %c0_21 = arith.constant 0 : index
      %c0_22 = arith.constant 0 : index
      %42 = vector.load %arg9[%c0_21, %c0_22] : memref<8x1xf32, #tpu.memory_space<vmem>>, vector<8x1xf32>
      tpu.vector_store %arg9[%c0_21, %c0_22], %41 {strides = array<i32>} : memref<8x1xf32, #tpu.memory_space<vmem>>, vector<8x1xf32>,
      %c0_23 = arith.constant 0 : index
      %c0_24 = arith.constant 0 : index
      %43 = vector.load %arg10[%c0_23, %c0_24] : memref<8x1xf32, #tpu.memory_space<vmem>>, vector<8x1xf32>
      %cst_25 = arith.constant 0.000000e+00 : f32
      %44 = vector.broadcast %cst_25 : f32 to vector<8x16xf32>
      %45 = arith.select %10, %5, %44 : vector<8x16xi1>, vector<8x16xf32>
      %cst_26 = arith.constant dense<0.000000e+00> : vector<8xf32>
      %46 = vector.multi_reduction <add>, %45, %cst_26 [1] : vector<8x16xf32> to vector<8xf32>
      %47 = vector.shape_cast %46 : vector<8xf32> to vector<8x1xf32>
      %48 = arith.addf %43, %47 : vector<8x1xf32>
      %c0_27 = arith.constant 0 : index
      %c0_28 = arith.constant 0 : index
      %49 = vector.load %arg10[%c0_27, %c0_28] : memref<8x1xf32, #tpu.memory_space<vmem>>, vector<8x1xf32>
      tpu.vector_store %arg10[%c0_27, %c0_28], %48 {strides = array<i32>} : memref<8x1xf32, #tpu.memory_space<vmem>>, vector<8x1xf32>,
      %c0_29 = arith.constant 0 : index
      %c0_30 = arith.constant 0 : index
      %50 = vector.load %arg8[%c0_29, %c0_30] : memref<8x1xf32, #tpu.memory_space<vmem>>, vector<8x1xf32>
      tpu.vector_store %arg8[%c0_29, %c0_30], %31 {strides = array<i32>} : memref<8x1xf32, #tpu.memory_space<vmem>>, vector<8x1xf32>,
    } else {
    }
    %c0_i32_13 = arith.constant 0 : i32
    %25 = arith.cmpi eq, %arg1, %c0_i32_13 : i32
    %26 = arith.extui %25 : i1 to i32
    %c0_i32_14 = arith.constant 0 : i32
    %27 = arith.cmpi ne, %26, %c0_i32_14 : i32
    scf.if %27 {
      %c0_15 = arith.constant 0 : index
      %c0_16 = arith.constant 0 : index
      %28 = vector.load %arg6[%c0_15, %c0_16] : memref<8x1xf32, #tpu.memory_space<vmem>>, vector<8x1xf32>
      %c0_17 = arith.constant 0 : index
      %c0_18 = arith.constant 0 : index
      %29 = vector.load %arg8[%c0_17, %c0_18] : memref<8x1xf32, #tpu.memory_space<vmem>>, vector<8x1xf32>
      %c0_19 = arith.constant 0 : index
      %c0_20 = arith.constant 0 : index
      %30 = vector.load %arg9[%c0_19, %c0_20] : memref<8x1xf32, #tpu.memory_space<vmem>>, vector<8x1xf32>
      %31 = math.log %30 : vector<8x1xf32>
      %32 = arith.addf %29, %31 : vector<8x1xf32>
      %cst_21 = arith.constant 0.000000e+00 : f32
      %33 = vector.broadcast %cst_21 : f32 to vector<8x1xf32>
      %34 = arith.cmpf ogt, %28, %33 : vector<8x1xf32>
      %cst_22 = arith.constant 1.000000e+00 : f32
      %35 = vector.broadcast %cst_22 : f32 to vector<8x1xf32>
      %36 = arith.select %34, %28, %35 : vector<8x1xi1>, vector<8x1xf32>
      %c0_23 = arith.constant 0 : index
      %c0_24 = arith.constant 0 : index
      %37 = vector.load %arg10[%c0_23, %c0_24] : memref<8x1xf32, #tpu.memory_space<vmem>>, vector<8x1xf32>
      %38 = arith.mulf %28, %32 : vector<8x1xf32>
      %39 = arith.subf %37, %38 : vector<8x1xf32>
      %40 = arith.divf %39, %36 : vector<8x1xf32>
      %cst_25 = arith.constant 0.000000e+00 : f32
      %41 = vector.broadcast %cst_25 : f32 to vector<8x1xf32>
      %42 = arith.cmpf ogt, %28, %41 : vector<8x1xf32>
      %cst_26 = arith.constant 0.000000e+00 : f32
      %43 = vector.broadcast %cst_26 : f32 to vector<8x1xf32>
      %44 = arith.select %42, %40, %43 : vector<8x1xi1>, vector<8x1xf32>
      %cst_27 = arith.constant -1.000000e+00 : f32
      %45 = vector.broadcast %cst_27 : f32 to vector<8x1xf32>
      %46 = arith.mulf %45, %44 : vector<8x1xf32>
      %c0_28 = arith.constant 0 : index
      %c0_29 = arith.constant 0 : index
      %47 = vector.load %arg7[%c0_28, %c0_29] : memref<8x1xf32, #tpu.memory_space<vmem>>, vector<8x1xf32>
      tpu.vector_store %arg7[%c0_28, %c0_29], %46 {strides = array<i32>} : memref<8x1xf32, #tpu.memory_space<vmem>>, vector<8x1xf32>,
    } else {
    }
    return
  }
  func.func @transform_0(%arg0: i32, %arg1: i32) -> (i32, i32) {
    %c0_i32 = arith.constant 0 : i32
    %c0_i32_0 = arith.constant 0 : i32
    return %arg0, %c0_i32 : i32, i32
  }
  func.func @transform_1(%arg0: i32, %arg1: i32) -> (i32, i32) {
    %c0_i32 = arith.constant 0 : i32
    %c0_i32_0 = arith.constant 0 : i32
    return %arg1, %c0_i32 : i32, i32
  }
  func.func @transform_2(%arg0: i32, %arg1: i32) -> (i32, i32) {
    %c0_i32 = arith.constant 0 : i32
    %c0_i32_0 = arith.constant 0 : i32
    return %arg0, %c0_i32 : i32, i32
  }
  func.func @transform_3(%arg0: i32, %arg1: i32) -> (i32, i32) {
    %c0_i32 = arith.constant 0 : i32
    %c0_i32_0 = arith.constant 0 : i32
    return %c0_i32, %arg1 : i32, i32
  }
  func.func @transform_4(%arg0: i32, %arg1: i32) -> (i32, i32) {
    %c0_i32 = arith.constant 0 : i32
    %c0_i32_0 = arith.constant 0 : i32
    return %arg0, %c0_i32 : i32, i32
  }
  func.func @transform_5(%arg0: i32, %arg1: i32) -> (i32, i32) {
    %c0_i32 = arith.constant 0 : i32
    %c0_i32_0 = arith.constant 0 : i32
    return %arg0, %c0_i32 : i32, i32
  }
}

</mosaic_0001>

<llo_original>
// kernel: tpu_custom_call.1
$region0: #{tpu_custom_call.1}
  #allocation0 [shape = 'u32[]', space=smem, size = 0x4, offset = 0x4, fixed_abs, tag = 'smem constant byte address 0x4 - core index']
  #allocation1 [shape = 'u32[144,128]{1,0:T(1,128)}', space=vmem, size = 0x12000, scoped, tag = 'internal scratch']
  #allocation2 [shape = 'f32[8,1]{1,0:T(8,128)}', space=vmem, size = 0x1000, scoped, tag = 'scratch operand']
  #allocation3 [shape = 'f32[8,1]{1,0:T(8,128)}', space=vmem, size = 0x1000, scoped, tag = 'scratch operand']
  #allocation4 [shape = 'f32[8,1]{1,0:T(8,128)}', space=vmem, size = 0x1000, scoped, tag = 'scratch operand']
  %s0 = inlined_call_operand.vmem [shape: bf16[16,128], index: 0, kind: input, shape index: {}]
  %s1 = inlined_call_operand.vmem [shape: bf16[16,128], index: 1, kind: input, shape index: {}]
  %s2 = inlined_call_operand.vmem [shape: s32[16,1], index: 2, kind: input, shape index: {}]
  %s3 = inlined_call_operand.vmem [shape: s32[1,16], index: 3, kind: input, shape index: {}]
  %s4 = inlined_call_operand.vmem [shape: f32[16,1], index: 4, kind: input, shape index: {}]
  %s5 = inlined_call_operand.vmem [shape: f32[16,1], index: 5, kind: output, shape index: {}]
  %s6 = sld [smem:[#allocation0]]
  $region69: #{tpu_custom_call.1} parent=0
    _
  %s8 = ssub.s32 1, %s6
  %s9 = scalar_select 0, %s8, %s6
  loop: start=0, step=1, limit=4
  $region2: #{tpu_custom_call.1} parent=0 // loop_pre_header
    _
  $region3: #{tpu_custom_call.1} parent=0 // loop_header
    %s11 = sphi 0, %s15
    %p12 = scmp.ge.s32.totalorder %s11, 4
    %s18 = sphi 0, %s30
    %s19 = sphi 0, %s26
    %s20 = sphi 0, %s18
    %s21 = sphi 0, %s19
    %s22 = sphi 0, %s20
    %s23 = sphi 0, %s21
    %s33 = sphi 0, %s35
    %s36 = sphi 0, %s33
    %s37 = sphi 0, %s36
    %s53 = sphi 0, %s37
    %s59 = sphi 0, %s61
    %s62 = sphi 0, %s59
    %s63 = sphi 0, %s62
    %s79 = sphi 0, %s63
    %s85 = sphi 0, %s87
    %s88 = sphi 0, %s85
    %s89 = sphi 0, %s88
    %s105 = sphi 0, %s89
    %s111 = sphi 0, %s113
    %s114 = sphi 0, %s111
    %s115 = sphi 0, %s114
    %s131 = sphi 0, %s115
    %s137 = sphi 0, %s139
    %s140 = sphi 0, %s137
    %s141 = sphi 0, %s140
    %s157 = sphi 0, %s141
    %s163 = sphi 0, %s165
    %s166 = sphi 0, %s163
    %s167 = sphi 0, %s166
    %s183 = sphi 0, %s167
  $region4: #{tpu_custom_call.1} parent=0 // loop_header_branch
    %14 = sbr.rel (%p12) target = $region8
  $region5: #{tpu_custom_call.1} parent=0 // loop_body
    %s16 = ssub.s32 %s11, 1
    %s17 = ssub.s32 %s11, 2
    %s24 = sadd.s32 1, %s19
    %p25 = scmp.ge.s32.totalorder %s24, 1
    %s26 = scalar_select %p25, 0, %s24
    %s27 = sadd.s32 1, %s18
    %s28 = scalar_select %p25, %s27, %s18
    %p29 = scmp.ge.s32.totalorder %s28, 2
    %s30 = scalar_select %p29, 0, %s28
    %s31 = ssub.s32 %s18, %s30
    %p32 = scmp.eq.s32.totalorder %s31, 0
    %s34 = sadd.s32 %s33, 1
    %s35 = scalar_select %p32, %s33, %s34
    %p38 = pneg %p32
    %p39 = scmp.eq.s32.totalorder %s11, 1
    %p40 = por %p38, %p39
    %p41 = scmp.ne.s32.totalorder %s33, %s36
    %p42 = scmp.eq.s32.totalorder %s11, 0
    %p43 = por %p41, %p42
    %p44 = scmp.ne.s32.totalorder %s33, %s36
    %p45 = scmp.eq.s32.totalorder %s16, 1
    %p46 = por %p44, %p45
    %p47 = scmp.ne.s32.totalorder %s36, %s37
    %p48 = scmp.eq.s32.totalorder %s16, 0
    %p49 = por %p47, %p48
    %p50 = scmp.ne.s32.totalorder %s36, %s37
    %p51 = scmp.eq.s32.totalorder %s17, 1
    %p52 = por %p50, %p51
    %p54 = scmp.ne.s32.totalorder %s37, %s53
    %p55 = scmp.eq.s32.totalorder %s17, 0
    %p56 = por %p54, %p55
    %s57 = ssub.s32 %s19, %s26
    %p58 = scmp.eq.s32.totalorder %s57, 0
    %s60 = sadd.s32 %s59, 1
    %s61 = scalar_select %p58, %s59, %s60
    %p64 = pneg %p58
    %p65 = scmp.eq.s32.totalorder %s11, 1
    %p66 = por %p64, %p65
    %p67 = scmp.ne.s32.totalorder %s59, %s62
    %p68 = scmp.eq.s32.totalorder %s11, 0
    %p69 = por %p67, %p68
    %p70 = scmp.ne.s32.totalorder %s59, %s62
    %p71 = scmp.eq.s32.totalorder %s16, 1
    %p72 = por %p70, %p71
    %p73 = scmp.ne.s32.totalorder %s62, %s63
    %p74 = scmp.eq.s32.totalorder %s16, 0
    %p75 = por %p73, %p74
    %p76 = scmp.ne.s32.totalorder %s62, %s63
    %p77 = scmp.eq.s32.totalorder %s17, 1
    %p78 = por %p76, %p77
    %p80 = scmp.ne.s32.totalorder %s63, %s79
    %p81 = scmp.eq.s32.totalorder %s17, 0
    %p82 = por %p80, %p81
    %s83 = ssub.s32 %s18, %s30
    %p84 = scmp.eq.s32.totalorder %s83, 0
    %s86 = sadd.s32 %s85, 1
    %s87 = scalar_select %p84, %s85, %s86
    %p90 = pneg %p84
    %p91 = scmp.eq.s32.totalorder %s11, 1
    %p92 = por %p90, %p91
    %p93 = scmp.ne.s32.totalorder %s85, %s88
    %p94 = scmp.eq.s32.totalorder %s11, 0
    %p95 = por %p93, %p94
    %p96 = scmp.ne.s32.totalorder %s85, %s88
    %p97 = scmp.eq.s32.totalorder %s16, 1
    %p98 = por %p96, %p97
    %p99 = scmp.ne.s32.totalorder %s88, %s89
    %p100 = scmp.eq.s32.totalorder %s16, 0
    %p101 = por %p99, %p100
    %p102 = scmp.ne.s32.totalorder %s88, %s89
    %p103 = scmp.eq.s32.totalorder %s17, 1
    %p104 = por %p102, %p103
    %p106 = scmp.ne.s32.totalorder %s89, %s105
    %p107 = scmp.eq.s32.totalorder %s17, 0
    %p108 = por %p106, %p107
    %s109 = ssub.s32 %s19, %s26
    %p110 = scmp.eq.s32.totalorder %s109, 0
    %s112 = sadd.s32 %s111, 1
    %s113 = scalar_select %p110, %s111, %s112
    %p116 = pneg %p110
    %p117 = scmp.eq.s32.totalorder %s11, 1
    %p118 = por %p116, %p117
    %p119 = scmp.ne.s32.totalorder %s111, %s114
    %p120 = scmp.eq.s32.totalorder %s11, 0
    %p121 = por %p119, %p120
    %p122 = scmp.ne.s32.totalorder %s111, %s114
    %p123 = scmp.eq.s32.totalorder %s16, 1
    %p124 = por %p122, %p123
    %p125 = scmp.ne.s32.totalorder %s114, %s115
    %p126 = scmp.eq.s32.totalorder %s16, 0
    %p127 = por %p125, %p126
    %p128 = scmp.ne.s32.totalorder %s114, %s115
    %p129 = scmp.eq.s32.totalorder %s17, 1
    %p130 = por %p128, %p129
    %p132 = scmp.ne.s32.totalorder %s115, %s131
    %p133 = scmp.eq.s32.totalorder %s17, 0
    %p134 = por %p132, %p133
    %s135 = ssub.s32 %s18, %s30
    %p136 = scmp.eq.s32.totalorder %s135, 0
    %s138 = sadd.s32 %s137, 1
    %s139 = scalar_select %p136, %s137, %s138
    %p142 = pneg %p136
    %p143 = scmp.eq.s32.totalorder %s11, 1
    %p144 = por %p142, %p143
    %p145 = scmp.ne.s32.totalorder %s137, %s140
    %p146 = scmp.eq.s32.totalorder %s11, 0
    %p147 = por %p145, %p146
    %p148 = scmp.ne.s32.totalorder %s137, %s140
    %p149 = scmp.eq.s32.totalorder %s16, 1
    %p150 = por %p148, %p149
    %p151 = scmp.ne.s32.totalorder %s140, %s141
    %p152 = scmp.eq.s32.totalorder %s16, 0
    %p153 = por %p151, %p152
    %p154 = scmp.ne.s32.totalorder %s140, %s141
    %p155 = scmp.eq.s32.totalorder %s17, 1
    %p156 = por %p154, %p155
    %p158 = scmp.ne.s32.totalorder %s141, %s157
    %p159 = scmp.eq.s32.totalorder %s17, 0
    %p160 = por %p158, %p159
    %s161 = ssub.s32 %s18, %s30
    %p162 = scmp.eq.s32.totalorder %s161, 0
    %s164 = sadd.s32 %s163, 1
    %s165 = scalar_select %p162, %s163, %s164
    %p168 = pneg %p162
    %p169 = scmp.eq.s32.totalorder %s11, 1
    %p170 = por %p168, %p169
    %p171 = scmp.ne.s32.totalorder %s163, %s166
    %p172 = scmp.eq.s32.totalorder %s11, 0
    %p173 = por %p171, %p172
    %p174 = scmp.ne.s32.totalorder %s163, %s166
    %p175 = scmp.eq.s32.totalorder %s16, 1
    %p176 = por %p174, %p175
    %p177 = scmp.ne.s32.totalorder %s166, %s167
    %p178 = scmp.eq.s32.totalorder %s16, 0
    %p179 = por %p177, %p178
    %p180 = scmp.ne.s32.totalorder %s166, %s167
    %p181 = scmp.eq.s32.totalorder %s17, 1
    %p182 = por %p180, %p181
    %p184 = scmp.ne.s32.totalorder %s167, %s183
    %p185 = scmp.eq.s32.totalorder %s17, 0
    %p186 = por %p184, %p185
    %p187 = scmp.le.s32.totalorder 1, %s11
    %p188 = scmp.lt.s32.totalorder %s11, 3
    %p189 = pnand %p187, %p188
    %p190 = pneg %p189
    // Predicated region
    $region9: #{tpu_custom_call.1} parent=5 // pred_check
      _
    $region10: #{tpu_custom_call.1} parent=5 // pred_check_branch
      %192 = sbr.rel (%p189) target = $region12
    $region11: #{tpu_custom_call.1} parent=5 // pred_region
      %s193 = ssub.s32 %s11, 1
      // Predicated region
      $region13: #{tpu_custom_call.1} parent=11 // pred_check
        %p194 = pneg %p75
      $region14: #{tpu_custom_call.1} parent=11 // pred_check_branch
        %196 = sbr.rel (%p194) target = $region16
      $region15: #{tpu_custom_call.1} parent=11 // pred_region
        %s197 = smul.u32 2, %s21
        %p198 = scmp.lt.s32.totalorder %s197, 1
        %s199 = scalar_select %p198, %s197, 1
        %s200 = smul.addr %s199, 4
        %s201 = scalar_lea.vmem %s1, %s200
        %s202 = smul.u32 2, %s21
      $region16: #{tpu_custom_call.1} parent=11 // pred_fallthru
        _
      // Predicated region
      $region17: #{tpu_custom_call.1} parent=11 // pred_check
        %p203 = pneg %p127
      $region18: #{tpu_custom_call.1} parent=11 // pred_check_branch
        %205 = sbr.rel (%p203) target = $region20
      $region19: #{tpu_custom_call.1} parent=11 // pred_region
        %p206 = scmp.lt.s32.totalorder %s21, 0
        %s207 = scalar_select %p206, %s21, 0
        %s208 = scalar_lea.vmem %s3, %s207
      $region20: #{tpu_custom_call.1} parent=11 // pred_fallthru
        _
    $region12: #{tpu_custom_call.1} parent=5 // pred_fallthru
      _
    %p209 = scmp.lt.s32.totalorder %s11, 2
    // Predicated region
    $region21: #{tpu_custom_call.1} parent=5 // pred_check
      %p210 = pneg %p209
    $region22: #{tpu_custom_call.1} parent=5 // pred_check_branch
      %212 = sbr.rel (%p210) target = $region24
    $region23: #{tpu_custom_call.1} parent=5 // pred_region
      // Predicated region
      $region25: #{tpu_custom_call.1} parent=23 // pred_check
        %p213 = pneg %p43
      $region26: #{tpu_custom_call.1} parent=23 // pred_check_branch
        %215 = sbr.rel (%p213) target = $region28
      $region27: #{tpu_custom_call.1} parent=23 // pred_region
        %p216 = scmp.lt.s32.totalorder %s18, 1
        %s217 = scalar_select %p216, %s18, 1
        %s218 = smul.addr %s217, 4
        %s219 = scalar_lea.vmem %s0, %s218
      $region28: #{tpu_custom_call.1} parent=23 // pred_fallthru
        _
      // Predicated region
      $region29: #{tpu_custom_call.1} parent=23 // pred_check
        %p220 = pneg %p95
      $region30: #{tpu_custom_call.1} parent=23 // pred_check_branch
        %222 = sbr.rel (%p220) target = $region32
      $region31: #{tpu_custom_call.1} parent=23 // pred_region
        %p223 = scmp.lt.s32.totalorder %s18, 1
        %s224 = scalar_select %p223, %s18, 1
        %s225 = smul.addr %s224, 8
        %s226 = scalar_lea.vmem %s2, %s225
      $region32: #{tpu_custom_call.1} parent=23 // pred_fallthru
        _
      // Predicated region
      $region33: #{tpu_custom_call.1} parent=23 // pred_check
        %p227 = pneg %p147
      $region34: #{tpu_custom_call.1} parent=23 // pred_check_branch
        %229 = sbr.rel (%p227) target = $region36
      $region35: #{tpu_custom_call.1} parent=23 // pred_region
        %p230 = scmp.lt.s32.totalorder %s18, 1
        %s231 = scalar_select %p230, %s18, 1
        %s232 = smul.addr %s231, 8
        %s233 = scalar_lea.vmem %s4, %s232
      $region36: #{tpu_custom_call.1} parent=23 // pred_fallthru
        _
    $region24: #{tpu_custom_call.1} parent=5 // pred_fallthru
      _
    %p234 = scmp.le.s32.totalorder 1, %s11
    %p235 = scmp.lt.s32.totalorder %s11, 3
    %p236 = pnand %p234, %p235
    %p237 = pneg %p236
    // Predicated region
    $region37: #{tpu_custom_call.1} parent=5 // pred_check
      _
    $region38: #{tpu_custom_call.1} parent=5 // pred_check_branch
      %239 = sbr.rel (%p236) target = $region40
    $region39: #{tpu_custom_call.1} parent=5 // pred_region
      %s240 = ssub.s32 %s11, 1
      %p241 = scmp.lt.s32.totalorder %s20, 1
      %s242 = scalar_select %p241, %s20, 1
      %s243 = smul.addr %s242, 4
      %s244 = scalar_lea.vmem %s0, %s243
      %p245 = pneg %p49
      %p246 = pneg %p46
      %s247 = smul.u32 2, %s21
      %p248 = scmp.lt.s32.totalorder %s247, 1
      %s249 = scalar_select %p248, %s247, 1
      %s250 = smul.addr %s249, 4
      %s251 = scalar_lea.vmem %s1, %s250
      %p252 = pneg %p75
      %p253 = pneg %p72
      %p254 = scmp.lt.s32.totalorder %s20, 1
      %s255 = scalar_select %p254, %s20, 1
      %s256 = smul.addr %s255, 8
      %s257 = scalar_lea.vmem %s2, %s256
      %p258 = pneg %p101
      %p259 = pneg %p98
      %p260 = scmp.lt.s32.totalorder %s21, 0
      %s261 = scalar_select %p260, %s21, 0
      %s262 = scalar_lea.vmem %s3, %s261
      %p263 = pneg %p127
      %p264 = pneg %p124
      %p265 = scmp.lt.s32.totalorder %s20, 1
      %s266 = scalar_select %p265, %s20, 1
      %s267 = smul.addr %s266, 8
      %s268 = scalar_lea.vmem %s4, %s267
      %p269 = pneg %p153
      %p270 = pneg %p150
      %p271 = pneg %p179
      %p272 = pneg %p176
      %p273 = scmp.lt.s32.totalorder %s20, 1
      %s274 = scalar_select %p273, %s20, 1
      %s275 = smul.addr %s274, 8
      %s276 = scalar_lea.vmem %s5, %s275
      %p277 = scmp.lt.s32.totalorder %s20, 1
      %s278 = scalar_select %p277, %s20, 1
      %s279 = smul.addr %s278, 4
      %s280 = scalar_lea.vmem %s0, %s279
      %s281 = smul.u32 2, %s21
      %p282 = scmp.lt.s32.totalorder %s281, 1
      %s283 = scalar_select %p282, %s281, 1
      %s284 = smul.addr %s283, 4
      %s285 = scalar_lea.vmem %s1, %s284
      %s286 = smul.u32 2, %s21
      %p287 = scmp.lt.s32.totalorder %s20, 1
      %s288 = scalar_select %p287, %s20, 1
      %s289 = smul.addr %s288, 8
      %s290 = scalar_lea.vmem %s2, %s289
      %p291 = scmp.lt.s32.totalorder %s21, 0
      %s292 = scalar_select %p291, %s21, 0
      %s293 = scalar_lea.vmem %s3, %s292
      %p294 = scmp.lt.s32.totalorder %s20, 1
      %s295 = scalar_select %p294, %s20, 1
      %s296 = smul.addr %s295, 8
      %s297 = scalar_lea.vmem %s4, %s296
      %p298 = scmp.lt.s32.totalorder %s20, 1
      %s299 = scalar_select %p298, %s20, 1
      %s300 = smul.addr %s299, 8
      %s301 = scalar_lea.vmem %s5, %s300
      %p303 = scmp.eq.s32.totalorder %s21, 0
      // Predicated region
      $region41: #{tpu_custom_call.1} parent=39 // pred_check
        %p304 = pneg %p303
      $region42: #{tpu_custom_call.1} parent=39 // pred_check_branch
        %306 = sbr.rel (%p304) target = $region44
      $region43: #{tpu_custom_call.1} parent=39 // pred_region
        %vm307 = vcmask 7168
        %308 = vst.msk [vmem:[#allocation2] sm:$0xff] %vm307, -1e+30
        %309 = vst.msk [vmem:[#allocation3] sm:$0xff] %vm307, 0.0
        %310 = vst.msk [vmem:[#allocation4] sm:$0xff] %vm307, 0.0
      $region44: #{tpu_custom_call.1} parent=39 // pred_fallthru
        _
      %v311 = vld [vmem:[%s280] sm:$0xf]
      %v312 = vld [vmem:[%s285] sm:$0xf]
      %v313 = vld [vmem:[%s285 + $0x4] sm:$0xf]
      %v316 = vunpack.c.l.b16 %v312
      %v317 = vunpack.c.l.b16 %v313
      %v318 = vpack.c.b16 %v317, %v316
      %320 = vmatprep.subr.bf16.mxu0 0
      %321 = vmatpush1.bf16.xpose.msra.mxu0 0
      %322 = vmatprep.subr.bf16.mxu0 0
      %323 = vmatpush1.bf16.xpose.msra.mxu0 0
      %324 = vmatprep.subr.bf16.mxu0 0
      %325 = vmatpush1.bf16.xpose.msra.mxu0 0
      %326 = vmatprep.subr.bf16.mxu0 0
      %327 = vmatpush1.bf16.xpose.msra.mxu0 0
      %328 = vmatprep.subr.bf16.mxu0 0
      %329 = vmatpush1.bf16.xpose.msra.mxu0 0
      %330 = vmatprep.subr.bf16.mxu0 0
      %331 = vmatpush1.bf16.xpose.msra.mxu0 0
      %332 = vmatprep.subr.bf16.mxu0 0
      %333 = vmatpush1.bf16.xpose.msra.mxu0 0
      %334 = vmatprep.subr.bf16.mxu0 0
      %335 = vmatpush1.bf16.xpose.msra.mxu0 %v318
      %336 = vmatprep.subr.bf16.mxu0 0
      %337 = vmatpush2.bf16.xpose.msra.mxu0 0
      %338 = vmatprep.subr.bf16.mxu0 0
      %339 = vmatpush2.bf16.xpose.msra.mxu0 0
      %340 = vmatprep.subr.bf16.mxu0 0
      %341 = vmatpush2.bf16.xpose.msra.mxu0 0
      %342 = vmatprep.subr.bf16.mxu0 0
      %343 = vmatpush2.bf16.xpose.msra.mxu0 0
      %344 = vmatprep.subr.bf16.mxu0 0
      %345 = vmatpush2.bf16.xpose.msra.mxu0 0
      %346 = vmatprep.subr.bf16.mxu0 0
      %347 = vmatpush2.bf16.xpose.msra.mxu0 0
      %348 = vmatprep.subr.bf16.mxu0 0
      %349 = vmatpush2.bf16.xpose.msra.mxu0 0
      %350 = vmatprep.subr.bf16.mxu0 0
      %351 = vmatpush2.bf16.xpose.msra.mxu0 0
      %352 = vmatprep.mubr.bf16.mxu0 0
      %353 = vmatmul.mubr.bf16.gmra.mxu0 %v311
      %v354 = vpop.f32.mrf.mxu0
      %v355 = vadd.f32 0.0, %v354
      %v356 = vpop.f32.mrf.mxu0
      %v357 = vpop.f32.mrf.mxu0
      %v358 = vpop.f32.mrf.mxu0
      %359 = vdwg.mxu0
      %v360 = vld [vmem:[%s290] sm:$0xff]
      %v361 = vld [vmem:[%s293] sm:$0x1]
      %362 = vset.pattern.permute.xlu0 0
      %363 = vperm.xlu0 %362, %v360
      %v364 = vpop.permute.xlu0 %363
      %v365 = vlaneseq
      %v366 = vshrl.u32 %v365, 7
      %v367 = vsub.s32 0, %v366
      %v368 = vrot.slane %v361, %v367
      %vm369 = vcmp.eq.s32.totalorder %v364, %v368
      %s370 = smul.u32 %s20, 8
      %s371 = sadd.s32 %s21, 1
      %s372 = smul.u32 %s371, 16
      %p373 = scmp.lt.s32.totalorder %s370, %s372
      %s374 = smul.u32 %s21, 16
      %s375 = sadd.s32 %s20, 1
      %s376 = smul.u32 %s375, 8
      %p377 = scmp.lt.s32.totalorder %s374, %s376
      %p378 = pnand %p373, %p377
      %p379 = pneg %p378
      // Predicated region
      $region45: #{tpu_custom_call.1} parent=39 // pred_check
        _
      $region46: #{tpu_custom_call.1} parent=39 // pred_check_branch
        %381 = sbr.rel (%p378) target = $region48
      $region47: #{tpu_custom_call.1} parent=39 // pred_region
        %v382 = vlaneseq
        %v383 = vshrl.u32 %v382, 7
        %v384 = vstv %s370
        %v385 = vadd.s32 %v384, %v383
        %v386 = vlaneseq
        %v387 = vand.u32 %v386, 127
        %v388 = vstv %s374
        %v389 = vadd.s32 %v388, %v387
        %vm390 = vcmp.ne.s32.totalorder %v385, %v389
        %vm391 = vcmp.lt.s32.totalorder %v389, 16
        %v392 = vsel %vm391, 1, 0
        %vm393 = vcmp.eq.s32.totalorder %v392, 1
        %vm394 = vmand %vm390, %vm393
        %v395 = vsel %vm394, %v355, -1e+30
        %vm396 = vmand %vm369, %vm390
        %v397 = vld [vmem:[#allocation2] sm:$0xff]
        %vm398 = vcmask 130048
        %v399 = vsel %vm398, %v395, -inf
        %400 = vmax.xlane.f32.xlu0 %v399
        %v401 = vpop.xlane.xlu0 %400
        %v402 = vmax.f32 %v397, %v401
        %v403 = vsub.f32 %v397, %v402
        %v404 = vmul.f32 %v403, 1.442695
        %v405 = vpow.pop %v404
        %407 = vset.pattern.permute.xlu0 0
        %408 = vperm.xlu0 %407, %v402
        %v409 = vpop.permute.xlu0 %408
        %v411 = vsub.f32 %v395, %v409
        %v412 = vmul.f32 %v411, 1.442695
        %v413 = vpow.pop %v412
        %v414 = vld [vmem:[#allocation3] sm:$0xff]
        %v415 = vmul.f32 %v405, %v414
        %v416 = vsel %vm398, %v413, 0.0
        %417 = vadd.xlane.f32.xlu0 %v416
        %v418 = vpop.xlane.xlu0 %417
        %v419 = vadd.f32 %v415, %v418
        %vm420 = vcmask 7168
        %421 = vst.msk [vmem:[#allocation3] sm:$0xff] %vm420, %v419
        %v422 = vld [vmem:[#allocation4] sm:$0xff]
        %v423 = vsel %vm396, %v395, 0.0
        %v424 = vsel %vm398, %v423, 0.0
        %425 = vadd.xlane.f32.xlu0 %v424
        %v426 = vpop.xlane.xlu0 %425
        %v427 = vadd.f32 %v422, %v426
        %428 = vst.msk [vmem:[#allocation4] sm:$0xff] %vm420, %v427
        %429 = vst.msk [vmem:[#allocation2] sm:$0xff] %vm420, %v402
      $region48: #{tpu_custom_call.1} parent=39 // pred_fallthru
        _
      %p430 = pneg %p379
      // Predicated region
      $region49: #{tpu_custom_call.1} parent=39 // pred_check
        _
      $region50: #{tpu_custom_call.1} parent=39 // pred_check_branch
        %432 = sbr.rel (%p379) target = $region52
      $region51: #{tpu_custom_call.1} parent=39 // pred_region
        %v433 = vld [vmem:[#allocation2] sm:$0xff]
        %vm434 = vcmask 130048
        %v435 = vsel %vm434, %v355, -inf
        %436 = vmax.xlane.f32.xlu0 %v435
        %v437 = vpop.xlane.xlu0 %436
        %v438 = vmax.f32 %v433, %v437
        %v439 = vsub.f32 %v433, %v438
        %v440 = vmul.f32 %v439, 1.442695
        %v441 = vpow.pop %v440
        %443 = vset.pattern.permute.xlu0 0
        %444 = vperm.xlu0 %443, %v438
        %v445 = vpop.permute.xlu0 %444
        %v447 = vsub.f32 %v355, %v445
        %v448 = vmul.f32 %v447, 1.442695
        %v449 = vpow.pop %v448
        %v450 = vld [vmem:[#allocation3] sm:$0xff]
        %v451 = vmul.f32 %v441, %v450
        %v452 = vsel %vm434, %v449, 0.0
        %453 = vadd.xlane.f32.xlu0 %v452
        %v454 = vpop.xlane.xlu0 %453
        %v455 = vadd.f32 %v451, %v454
        %vm456 = vcmask 7168
        %457 = vst.msk [vmem:[#allocation3] sm:$0xff] %vm456, %v455
        %v458 = vld [vmem:[#allocation4] sm:$0xff]
        %v459 = vsel %vm369, %v355, 0.0
        %v460 = vsel %vm434, %v459, 0.0
        %461 = vadd.xlane.f32.xlu0 %v460
        %v462 = vpop.xlane.xlu0 %461
        %v463 = vadd.f32 %v458, %v462
        %464 = vst.msk [vmem:[#allocation4] sm:$0xff] %vm456, %v463
        %465 = vst.msk [vmem:[#allocation2] sm:$0xff] %vm456, %v438
      $region52: #{tpu_custom_call.1} parent=39 // pred_fallthru
        _
      // Predicated region
      $region53: #{tpu_custom_call.1} parent=39 // pred_check
        %p466 = pneg %p303
      $region54: #{tpu_custom_call.1} parent=39 // pred_check_branch
        %468 = sbr.rel (%p466) target = $region56
      $region55: #{tpu_custom_call.1} parent=39 // pred_region
        %v469 = vld [vmem:[%s297] sm:$0xff]
        %v470 = vld [vmem:[#allocation2] sm:$0xff]
        %v471 = vld [vmem:[#allocation3] sm:$0xff]
        %v472 = vlog2.pop %v471
        %v473 = vmul.f32 %v472, 0.6931472
        %v474 = vadd.f32 %v470, %v473
        %vm475 = vcmp.gt.f32.partialorder %v469, 0.0
        %v476 = vsel %vm475, %v469, 1.0
        %v477 = vld [vmem:[#allocation4] sm:$0xff]
        %v478 = vmul.f32 %v469, %v474
        %v479 = vsub.f32 %v477, %v478
        %v480 = vrcp.pop %v476
        %v481 = vmul.f32 %v479, %v480
        %v482 = vsel %vm475, %v481, 0.0
        %v483 = vmul.f32 %v482, -1.0
        %vm484 = vcmask 7168
        %485 = vst.msk [vmem:[%s301] sm:$0xff] %vm484, %v483
      $region56: #{tpu_custom_call.1} parent=39 // pred_fallthru
        _
      %p486 = scmp.lt.s32.totalorder %s20, 1
      %s487 = scalar_select %p486, %s20, 1
      %s488 = smul.addr %s487, 8
      %s489 = scalar_lea.vmem %s5, %s488
      // Predicated region
      $region57: #{tpu_custom_call.1} parent=39 // pred_check
        %p490 = pneg %p176
      $region58: #{tpu_custom_call.1} parent=39 // pred_check_branch
        %492 = sbr.rel (%p490) target = $region60
      $region59: #{tpu_custom_call.1} parent=39 // pred_region
        _
      $region60: #{tpu_custom_call.1} parent=39 // pred_fallthru
        _
    $region40: #{tpu_custom_call.1} parent=5 // pred_fallthru
      _
    %p493 = scmp.le.s32.totalorder 2, %s11
    // Predicated region
    $region61: #{tpu_custom_call.1} parent=5 // pred_check
      %p494 = pneg %p493
    $region62: #{tpu_custom_call.1} parent=5 // pred_check_branch
      %496 = sbr.rel (%p494) target = $region64
    $region63: #{tpu_custom_call.1} parent=5 // pred_region
      %s497 = ssub.s32 %s11, 2
      // Predicated region
      $region65: #{tpu_custom_call.1} parent=63 // pred_check
        %p498 = pneg %p182
      $region66: #{tpu_custom_call.1} parent=63 // pred_check_branch
        %500 = sbr.rel (%p498) target = $region68
      $region67: #{tpu_custom_call.1} parent=63 // pred_region
        %p501 = scmp.lt.s32.totalorder %s22, 1
        %s502 = scalar_select %p501, %s22, 1
        %s503 = smul.addr %s502, 8
        %s504 = scalar_lea.vmem %s5, %s503
      $region68: #{tpu_custom_call.1} parent=63 // pred_fallthru
        _
    $region64: #{tpu_custom_call.1} parent=5 // pred_fallthru
      _
  $region6: #{tpu_custom_call.1} parent=0 // loop_footer
    %s15 = sadd.s32 1, %s11
  $region7: #{tpu_custom_call.1} parent=0 // loop_footer_branch
    %10 = sbr.rel target = $region3
  $region8: #{tpu_custom_call.1} parent=0 // loop_exit
    _

</llo_original>
